<compile_context>
chip_gen: v7x
topology: tpu7x:2x2x1
jax: 0.10.0
libtpu: 0.0.40
codegen_flags: <defaults>
</compile_context>

<pallas_src>
import functools

import jax
import jax.numpy as jnp
from jax.experimental import pallas as pl
from jax.experimental.pallas import tpu as pltpu

_NEG_FILL = -1e30  # masked-class value: exp(_NEG_FILL - max) underflows to exactly 0 in f32


def _round_up(v: int, m: int) -> int:
    return ((v + m - 1) // m) * m


def _ce_kernel(x_ref, label_ref, nll_ref, m_sc, l_sc, p_sc, *, tile_c: int, num_classes: int):
    """Streaming cross-entropy NLL per row.

    x_ref:     (TILE_N, TILE_C) logits tile (VMEM, auto-pipelined)
    label_ref: (TILE_N, 1) int32 class indices
    nll_ref:   (TILE_N, 1) f32 per-row -log softmax[label] (written on last class tile)
    m_sc/l_sc/p_sc: running row-max / sum-exp / picked-logit accumulators (f32 VMEM scratch)
    """
    k = pl.program_id(1)

    @pl.when(k == 0)
    def _init():
        m_sc[...] = jnp.full_like(m_sc, -jnp.inf)
        l_sc[...] = jnp.zeros_like(l_sc)
        p_sc[...] = jnp.zeros_like(p_sc)

    # Read the tile once; everything below reuses this copy.
    x = x_ref[...].astype(jnp.float32)          # (TILE_N, TILE_C)
    labels = label_ref[...]                     # (TILE_N, 1) int32

    # Local column index within this class tile (generated once per tile).
    col = jax.lax.broadcasted_iota(jnp.int32, x.shape, 1)

    # Mask columns beyond the real class count (only bites in the last class tile);
    # no host-side padding of the logits is needed.
    x = jnp.where(col < (num_classes - k * tile_c), x, _NEG_FILL)

    # Online, numerically-stable log-sum-exp update.
    m_prev = m_sc[...]
    m_new = jnp.maximum(m_prev, jnp.max(x, axis=-1, keepdims=True))
    l_sc[...] = (l_sc[...] * jnp.exp(m_prev - m_new)
                 + jnp.sum(jnp.exp(x - m_new), axis=-1, keepdims=True))
    m_sc[...] = m_new

    # Gather logit at the label index: shift the (TILE_N,1) labels by the scalar tile
    # offset and compare against the local iota (one-hot select, no dynamic gather).
    # Tiles that don't contain the label contribute exactly 0.
    p_sc[...] += jnp.sum(jnp.where(col == (labels - k * tile_c), x, 0.0),
                         axis=-1, keepdims=True)

    @pl.when(k == pl.num_programs(1) - 1)
    def _finalize():
        # nll = logsumexp(x) - x[label]
        nll_ref[...] = m_sc[...] + jnp.log(l_sc[...]) - p_sc[...]


def crossentropy_loss(x, label, loss_weight: float = 1.0,
                      max_tile_bytes: int = 4 * 1024 * 1024):
    """Pallas TPU equivalent of CrossentropyLoss.forward(x, label) (mean reduction)."""
    N, C = x.shape
    label2d = label.astype(jnp.int32).reshape(N, 1)
    itemsize = jnp.dtype(x.dtype).itemsize

    # Row tile: multiple of 8, capped at 256; split into >= 2 row blocks when N allows
    # so the 'parallel' axis can shard across v7x's two TensorCores.
    tile_n = min(256, _round_up(N, 8))
    if N > 8 and N <= tile_n:
        tile_n = _round_up((N + 1) // 2, 8)

    # Class tile: sized in bytes (dtype-aware) so bf16 logits get 2x the width at the
    # same ~4 MiB/buffer budget (double-buffered ~8 MiB -> fits v5e/v6e/v7x VMEM).
    tile_c = (max_tile_bytes // (tile_n * itemsize)) // 128 * 128
    tile_c = max(128, min(tile_c, _round_up(C, 128)))

    grid = (pl.cdiv(N, tile_n), pl.cdiv(C, tile_c))

    nll = pl.pallas_call(
        functools.partial(_ce_kernel, tile_c=tile_c, num_classes=C),
        out_shape=jax.ShapeDtypeStruct((N, 1), jnp.float32),
        grid_spec=pltpu.PrefetchScalarGridSpec(
            num_scalar_prefetch=0,
            grid=grid,
            in_specs=[
                pl.BlockSpec((tile_n, tile_c), lambda i, k: (i, k)),  # logits tile
                pl.BlockSpec((tile_n, 1), lambda i, k: (i, 0)),       # labels (per row tile)
            ],
            out_specs=pl.BlockSpec((tile_n, 1), lambda i, k: (i, 0)),  # per-row NLL
            scratch_shapes=[
                pltpu.VMEM((tile_n, 1), jnp.float32),  # running row max
                pltpu.VMEM((tile_n, 1), jnp.float32),  # running sum-exp
                pltpu.VMEM((tile_n, 1), jnp.float32),  # picked logit x[label]
            ],
        ),
        compiler_params=pltpu.CompilerParams(
            dimension_semantics=("parallel", "arbitrary"),
            vmem_limit_bytes=48 * 1024 * 1024,
        ),
        cost_estimate=pl.CostEstimate(
            flops=5 * N * C,
            transcendentals=N * C,
            bytes_accessed=N * C * itemsize + 2 * N * 4,
        ),
    )(x, label2d)

    # Tiny final reduction (mean over rows) + loss_weight scaling in plain JAX.
    return loss_weight * jnp.mean(nll[:, 0])


def _reference_ce(x, label, loss_weight=1.0):
    x = x.astype(jnp.float32)
    logp = jax.nn.log_softmax(x, axis=-1)
    nll = -jnp.take_along_axis(logp, label[:, None].astype(jnp.int32), axis=-1)[:, 0]
    return loss_weight * jnp.mean(nll)


if __name__ == "__main__":
    key = jax.random.PRNGKey(0)

    # Test 1: small aligned case (batch=8, classes=32).
    kx, kl, key = jax.random.split(key, 3)
    x1 = jax.random.normal(kx, (8, 32), dtype=jnp.float32)
    l1 = jax.random.randint(kl, (8,), 0, 32, dtype=jnp.int32)
    out1 = jax.block_until_ready(crossentropy_loss(x1, l1, 2.0))
    ref1 = _reference_ce(x1, l1, 2.0)
    assert jnp.allclose(out1, ref1, atol=1e-5, rtol=1e-5), (out1, ref1)

    # Test 2: ragged rows + ragged classes (no host-side padding; in-kernel mask path).
    kx, kl, key = jax.random.split(key, 3)
    x2 = jax.random.normal(kx, (13, 200), dtype=jnp.float32)
    l2 = jax.random.randint(kl, (13,), 0, 200, dtype=jnp.int32)
    out2 = jax.block_until_ready(crossentropy_loss(x2, l2, 1.0))
    ref2 = _reference_ce(x2, l2, 1.0)
    assert jnp.allclose(out2, ref2, atol=1e-5, rtol=1e-5), (out2, ref2)

    # Test 3: force multiple class tiles to exercise the streaming log-sum-exp.
    kx, kl, key = jax.random.split(key, 3)
    x3 = jax.random.normal(kx, (16, 512), dtype=jnp.float32)
    l3 = jax.random.randint(kl, (16,), 0, 512, dtype=jnp.int32)
    out3 = jax.block_until_ready(
        crossentropy_loss(x3, l3, 0.5, max_tile_bytes=8 * 128 * 4))
    ref3 = _reference_ce(x3, l3, 0.5)
    assert jnp.allclose(out3, ref3, atol=1e-5, rtol=1e-5), (out3, ref3)

    print("KERNEL_OK")
</pallas_src>

<mosaic_0001>
module attributes {stable_mosaic.version = 11 : i64} {
  func.func @_ce_kernel(%arg0: i32, %arg1: i32, %arg2: memref<8x128xf32, #tpu.memory_space<vmem>>, %arg3: memref<8x1xi32, #tpu.memory_space<vmem>>, %arg4: memref<8x1xf32, #tpu.memory_space<vmem>>, %arg5: memref<8x1xf32, #tpu.memory_space<vmem>>, %arg6: memref<8x1xf32, #tpu.memory_space<vmem>>, %arg7: memref<8x1xf32, #tpu.memory_space<vmem>>) attributes {dimension_semantics = [#tpu.dimension_semantics<parallel>, #tpu.dimension_semantics<arbitrary>], iteration_bounds = array<i64: 1, 1>, scalar_prefetch = 0 : i64, scratch_operands = 3 : i64, tpu.core_type = #tpu.core_type<tc>, window_params = [{transform_indices = @transform_0, window_bounds = array<i64: 8, 128>}, {transform_indices = @transform_1, window_bounds = array<i64: 8, 1>}, {transform_indices = @transform_2, window_bounds = array<i64: 8, 1>}]} {
    %c0_i32 = arith.constant 0 : i32
    %0 = arith.cmpi eq, %arg1, %c0_i32 : i32
    %1 = arith.extui %0 : i1 to i32
    %c0_i32_0 = arith.constant 0 : i32
    %2 = arith.cmpi ne, %1, %c0_i32_0 : i32
    scf.if %2 {
      %cst_23 = arith.constant 0xFF800000 : f32
      %43 = vector.broadcast %cst_23 : f32 to vector<8x1xf32>
      %c0_24 = arith.constant 0 : index
      %c0_25 = arith.constant 0 : index
      %44 = vector.load %arg5[%c0_24, %c0_25] : memref<8x1xf32, #tpu.memory_space<vmem>>, vector<8x1xf32>
      tpu.vector_store %arg5[%c0_24, %c0_25], %43 {strides = array<i32>} : memref<8x1xf32, #tpu.memory_space<vmem>>, vector<8x1xf32>,
      %cst_26 = arith.constant 0.000000e+00 : f32
      %45 = vector.broadcast %cst_26 : f32 to vector<8x1xf32>
      %c0_27 = arith.constant 0 : index
      %c0_28 = arith.constant 0 : index
      %46 = vector.load %arg6[%c0_27, %c0_28] : memref<8x1xf32, #tpu.memory_space<vmem>>, vector<8x1xf32>
      tpu.vector_store %arg6[%c0_27, %c0_28], %45 {strides = array<i32>} : memref<8x1xf32, #tpu.memory_space<vmem>>, vector<8x1xf32>,
      %cst_29 = arith.constant 0.000000e+00 : f32
      %47 = vector.broadcast %cst_29 : f32 to vector<8x1xf32>
      %c0_30 = arith.constant 0 : index
      %c0_31 = arith.constant 0 : index
      %48 = vector.load %arg7[%c0_30, %c0_31] : memref<8x1xf32, #tpu.memory_space<vmem>>, vector<8x1xf32>
      tpu.vector_store %arg7[%c0_30, %c0_31], %47 {strides = array<i32>} : memref<8x1xf32, #tpu.memory_space<vmem>>, vector<8x1xf32>,
    } else {
    }
    %c0 = arith.constant 0 : index
    %c0_1 = arith.constant 0 : index
    %3 = vector.load %arg2[%c0, %c0_1] : memref<8x128xf32, #tpu.memory_space<vmem>>, vector<8x128xf32>
    %c0_2 = arith.constant 0 : index
    %c0_3 = arith.constant 0 : index
    %4 = vector.load %arg3[%c0_2, %c0_3] : memref<8x1xi32, #tpu.memory_space<vmem>>, vector<8x1xi32>
    %5 = tpu.iota {dimensions = array<i32: 1>} : vector<8x128xi32>
    %c128_i32 = arith.constant 128 : i32
    %6 = arith.muli %arg1, %c128_i32 : i32
    %c32_i32 = arith.constant 32 : i32
    %7 = arith.subi %c32_i32, %6 : i32
    %8 = vector.broadcast %7 : i32 to vector<8x128xi32>
    %9 = arith.cmpi slt, %5, %8 : vector<8x128xi32>
    %cst = arith.constant -1.000000e+30 : f32
    %10 = vector.broadcast %cst : f32 to vector<8x128xf32>
    %11 = arith.select %9, %3, %10 : vector<8x128xi1>, vector<8x128xf32>
    %c0_4 = arith.constant 0 : index
    %c0_5 = arith.constant 0 : index
    %12 = vector.load %arg5[%c0_4, %c0_5] : memref<8x1xf32, #tpu.memory_space<vmem>>, vector<8x1xf32>
    %cst_6 = arith.constant dense<0xFF800000> : vector<8xf32>
    %13 = vector.multi_reduction <maximumf>, %11, %cst_6 [1] : vector<8x128xf32> to vector<8xf32>
    %14 = vector.shape_cast %13 : vector<8xf32> to vector<8x1xf32>
    %15 = arith.maximumf %12, %14 : vector<8x1xf32>
    %c0_7 = arith.constant 0 : index
    %c0_8 = arith.constant 0 : index
    %16 = vector.load %arg6[%c0_7, %c0_8] : memref<8x1xf32, #tpu.memory_space<vmem>>, vector<8x1xf32>
    %17 = arith.subf %12, %15 : vector<8x1xf32>
    %18 = math.exp %17 : vector<8x1xf32>
    %19 = arith.mulf %16, %18 : vector<8x1xf32>
    %20 = vector.broadcast %15 : vector<8x1xf32> to vector<8x128xf32>
    %21 = arith.subf %11, %20 : vector<8x128xf32>
    %22 = math.exp %21 : vector<8x128xf32>
    %cst_9 = arith.constant dense<0.000000e+00> : vector<8xf32>
    %23 = vector.multi_reduction <add>, %22, %cst_9 [1] : vector<8x128xf32> to vector<8xf32>
    %24 = vector.shape_cast %23 : vector<8xf32> to vector<8x1xf32>
    %25 = arith.addf %19, %24 : vector<8x1xf32>
    %c0_10 = arith.constant 0 : index
    %c0_11 = arith.constant 0 : index
    %26 = vector.load %arg6[%c0_10, %c0_11] : memref<8x1xf32, #tpu.memory_space<vmem>>, vector<8x1xf32>
    tpu.vector_store %arg6[%c0_10, %c0_11], %25 {strides = array<i32>} : memref<8x1xf32, #tpu.memory_space<vmem>>, vector<8x1xf32>,
    %c0_12 = arith.constant 0 : index
    %c0_13 = arith.constant 0 : index
    %27 = vector.load %arg5[%c0_12, %c0_13] : memref<8x1xf32, #tpu.memory_space<vmem>>, vector<8x1xf32>
    tpu.vector_store %arg5[%c0_12, %c0_13], %15 {strides = array<i32>} : memref<8x1xf32, #tpu.memory_space<vmem>>, vector<8x1xf32>,
    %c0_14 = arith.constant 0 : index
    %c0_15 = arith.constant 0 : index
    %28 = vector.load %arg7[%c0_14, %c0_15] : memref<8x1xf32, #tpu.memory_space<vmem>>, vector<8x1xf32>
    %c128_i32_16 = arith.constant 128 : i32
    %29 = arith.muli %arg1, %c128_i32_16 : i32
    %30 = vector.broadcast %29 : i32 to vector<8x1xi32>
    %31 = arith.subi %4, %30 : vector<8x1xi32>
    %32 = vector.broadcast %31 : vector<8x1xi32> to vector<8x128xi32>
    %33 = arith.cmpi eq, %5, %32 : vector<8x128xi32>
    %cst_17 = arith.constant 0.000000e+00 : f32
    %34 = vector.broadcast %cst_17 : f32 to vector<8x128xf32>
    %35 = arith.select %33, %11, %34 : vector<8x128xi1>, vector<8x128xf32>
    %cst_18 = arith.constant dense<0.000000e+00> : vector<8xf32>
    %36 = vector.multi_reduction <add>, %35, %cst_18 [1] : vector<8x128xf32> to vector<8xf32>
    %37 = vector.shape_cast %36 : vector<8xf32> to vector<8x1xf32>
    %38 = arith.addf %28, %37 : vector<8x1xf32>
    %c0_19 = arith.constant 0 : index
    %c0_20 = arith.constant 0 : index
    %39 = vector.load %arg7[%c0_19, %c0_20] : memref<8x1xf32, #tpu.memory_space<vmem>>, vector<8x1xf32>
    tpu.vector_store %arg7[%c0_19, %c0_20], %38 {strides = array<i32>} : memref<8x1xf32, #tpu.memory_space<vmem>>, vector<8x1xf32>,
    %c0_i32_21 = arith.constant 0 : i32
    %40 = arith.cmpi eq, %arg1, %c0_i32_21 : i32
    %41 = arith.extui %40 : i1 to i32
    %c0_i32_22 = arith.constant 0 : i32
    %42 = arith.cmpi ne, %41, %c0_i32_22 : i32
    scf.if %42 {
      %c0_23 = arith.constant 0 : index
      %c0_24 = arith.constant 0 : index
      %43 = vector.load %arg5[%c0_23, %c0_24] : memref<8x1xf32, #tpu.memory_space<vmem>>, vector<8x1xf32>
      %c0_25 = arith.constant 0 : index
      %c0_26 = arith.constant 0 : index
      %44 = vector.load %arg6[%c0_25, %c0_26] : memref<8x1xf32, #tpu.memory_space<vmem>>, vector<8x1xf32>
      %45 = math.log %44 : vector<8x1xf32>
      %46 = arith.addf %43, %45 : vector<8x1xf32>
      %c0_27 = arith.constant 0 : index
      %c0_28 = arith.constant 0 : index
      %47 = vector.load %arg7[%c0_27, %c0_28] : memref<8x1xf32, #tpu.memory_space<vmem>>, vector<8x1xf32>
      %48 = arith.subf %46, %47 : vector<8x1xf32>
      %c0_29 = arith.constant 0 : index
      %c0_30 = arith.constant 0 : index
      %49 = vector.load %arg4[%c0_29, %c0_30] : memref<8x1xf32, #tpu.memory_space<vmem>>, vector<8x1xf32>
      tpu.vector_store %arg4[%c0_29, %c0_30], %48 {strides = array<i32>} : memref<8x1xf32, #tpu.memory_space<vmem>>, vector<8x1xf32>,
    } else {
    }
    return
  }
  func.func @transform_0(%arg0: i32, %arg1: i32) -> (i32, i32) {
    %c0_i32 = arith.constant 0 : i32
    return %arg0, %arg1 : i32, i32
  }
  func.func @transform_1(%arg0: i32, %arg1: i32) -> (i32, i32) {
    %c0_i32 = arith.constant 0 : i32
    %c0_i32_0 = arith.constant 0 : i32
    return %arg0, %c0_i32 : i32, i32
  }
  func.func @transform_2(%arg0: i32, %arg1: i32) -> (i32, i32) {
    %c0_i32 = arith.constant 0 : i32
    %c0_i32_0 = arith.constant 0 : i32
    return %arg0, %c0_i32 : i32, i32
  }
}

</mosaic_0001>

<llo_original>
// kernel: tpu_custom_call.1
$region0: #{tpu_custom_call.1}
  #allocation0 [shape = 'u32[]', space=smem, size = 0x4, offset = 0x4, fixed_abs, tag = 'smem constant byte address 0x4 - core index']
  #allocation1 [shape = 'u32[144,128]{1,0:T(1,128)}', space=vmem, size = 0x12000, scoped, tag = 'internal scratch']
  #allocation2 [shape = 'f32[8,1]{1,0:T(8,128)}', space=vmem, size = 0x1000, scoped, tag = 'scratch operand']
  #allocation3 [shape = 'f32[8,1]{1,0:T(8,128)}', space=vmem, size = 0x1000, scoped, tag = 'scratch operand']
  #allocation4 [shape = 'f32[8,1]{1,0:T(8,128)}', space=vmem, size = 0x1000, scoped, tag = 'scratch operand']
  %s0 = inlined_call_operand.vmem [shape: f32[8,32], index: 0, kind: input, shape index: {}]
  %s1 = inlined_call_operand.vmem [shape: s32[8,1], index: 1, kind: input, shape index: {}]
  %s2 = inlined_call_operand.vmem [shape: f32[8,1], index: 2, kind: output, shape index: {}]
  %s3 = sld [smem:[#allocation0]]
  $region26: #{tpu_custom_call.1} parent=0
    _
  %s5 = ssub.s32 1, %s3
  %s6 = scalar_select 0, %s5, %s3
  // Predicated region
  $region2: #{tpu_custom_call.1} parent=0 // pred_check
    _
  $region3: #{tpu_custom_call.1} parent=0 // pred_check_branch
    %8 = sbr.rel (0) target = $region5
  $region4: #{tpu_custom_call.1} parent=0 // pred_region
    _
  $region5: #{tpu_custom_call.1} parent=0 // pred_fallthru
    _
  // Predicated region
  $region6: #{tpu_custom_call.1} parent=0 // pred_check
    _
  $region7: #{tpu_custom_call.1} parent=0 // pred_check_branch
    %10 = sbr.rel (0) target = $region9
  $region8: #{tpu_custom_call.1} parent=0 // pred_region
    _
  $region9: #{tpu_custom_call.1} parent=0 // pred_fallthru
    _
  %p11 = scmp.eq.s32.totalorder 0, 0
  // Predicated region
  $region10: #{tpu_custom_call.1} parent=0 // pred_check
    %p12 = pneg %p11
  $region11: #{tpu_custom_call.1} parent=0 // pred_check_branch
    %14 = sbr.rel (%p12) target = $region13
  $region12: #{tpu_custom_call.1} parent=0 // pred_region
    %vm15 = vcmask 7168
    %16 = vst.msk [vmem:[#allocation2] sm:$0xff] %vm15, -inf
    %17 = vst.msk [vmem:[#allocation3] sm:$0xff] %vm15, 0.0
    %18 = vst.msk [vmem:[#allocation4] sm:$0xff] %vm15, 0.0
  $region13: #{tpu_custom_call.1} parent=0 // pred_fallthru
    _
  %v19 = vld [vmem:[%s0] sm:$0xff]
  %v20 = vld [vmem:[%s1] sm:$0xff]
  %v21 = vlaneseq
  %v22 = vand.u32 %v21, 127
  %s23 = smul.u32 0, 128
  %s24 = ssub.s32 32, %s23
  %v25 = vstv %s24
  %vm26 = vcmp.lt.s32.totalorder %v22, %v25
  %v27 = vsel %vm26, %v19, -1e+30
  %v28 = vld [vmem:[#allocation2] sm:$0xff]
  %29 = vmax.xlane.f32.xlu0 %v27
  %v30 = vpop.xlane.xlu0 %29
  %v31 = vmax.f32 %v28, %v30
  %v32 = vld [vmem:[#allocation3] sm:$0xff]
  %v33 = vsub.f32 %v28, %v31
  %v34 = vmul.f32 %v33, 1.442695
  %v35 = vpow.pop %v34
  %v36 = vmul.f32 %v32, %v35
  %38 = vset.pattern.permute.xlu0 0
  %39 = vperm.xlu0 %38, %v31
  %v40 = vpop.permute.xlu0 %39
  %v42 = vsub.f32 %v27, %v40
  %v43 = vmul.f32 %v42, 1.442695
  %v44 = vpow.pop %v43
  %45 = vadd.xlane.f32.xlu0 %v44
  %v46 = vpop.xlane.xlu0 %45
  %v47 = vadd.f32 %v36, %v46
  %vm48 = vcmask 7168
  %49 = vst.msk [vmem:[#allocation3] sm:$0xff] %vm48, %v47
  %50 = vst.msk [vmem:[#allocation2] sm:$0xff] %vm48, %v31
  %v51 = vld [vmem:[#allocation4] sm:$0xff]
  %v52 = vstv %s23
  %v53 = vsub.s32 %v20, %v52
  %54 = vset.pattern.permute.xlu0 0
  %55 = vperm.xlu0 %54, %v53
  %v56 = vpop.permute.xlu0 %55
  %vm57 = vcmp.eq.s32.totalorder %v22, %v56
  %v58 = vsel %vm57, %v27, 0.0
  %59 = vadd.xlane.f32.xlu0 %v58
  %v60 = vpop.xlane.xlu0 %59
  %v61 = vadd.f32 %v51, %v60
  %62 = vst.msk [vmem:[#allocation4] sm:$0xff] %vm48, %v61
  // Predicated region
  $region14: #{tpu_custom_call.1} parent=0 // pred_check
    %p63 = pneg %p11
  $region15: #{tpu_custom_call.1} parent=0 // pred_check_branch
    %65 = sbr.rel (%p63) target = $region17
  $region16: #{tpu_custom_call.1} parent=0 // pred_region
    %v66 = vld [vmem:[#allocation2] sm:$0xff]
    %v67 = vld [vmem:[#allocation3] sm:$0xff]
    %v68 = vlog2.pop %v67
    %v69 = vmul.f32 %v68, 0.6931472
    %v70 = vadd.f32 %v66, %v69
    %v71 = vld [vmem:[#allocation4] sm:$0xff]
    %v72 = vsub.f32 %v70, %v71
    %73 = vst.msk [vmem:[%s2] sm:$0xff] %vm48, %v72
  $region17: #{tpu_custom_call.1} parent=0 // pred_fallthru
    _
  // Predicated region
  $region18: #{tpu_custom_call.1} parent=0 // pred_check
    _
  $region19: #{tpu_custom_call.1} parent=0 // pred_check_branch
    %75 = sbr.rel (0) target = $region21
  $region20: #{tpu_custom_call.1} parent=0 // pred_region
    _
  $region21: #{tpu_custom_call.1} parent=0 // pred_fallthru
    _
  // Predicated region
  $region22: #{tpu_custom_call.1} parent=0 // pred_check
    _
  $region23: #{tpu_custom_call.1} parent=0 // pred_check_branch
    %77 = sbr.rel (0) target = $region25
  $region24: #{tpu_custom_call.1} parent=0 // pred_region
    _
  $region25: #{tpu_custom_call.1} parent=0 // pred_fallthru
    _

</llo_original>
